<compile_context>
chip_gen: v6e
topology: v6e:2x2x1
jax: 0.10.0
libtpu: 0.0.40
codegen_flags: <defaults>
</compile_context>

<pallas_src>
import functools
import math

import jax
import jax.numpy as jnp
from jax.experimental import pallas as pl
from jax.experimental.pallas import tpu as pltpu

_LANES = 128
_VMEM_BUDGET_BYTES = 24 * 1024 * 1024   # conservative: fits v5e scoped / v7x 64 MiB
_VMEM_LIMIT_BYTES = 48 * 1024 * 1024    # <= v7x 64 MiB physical
_MAX_GROUP = 512


def _round_up(x, m):
    return -(-x // m) * m


def _cma_kernel(vis_ref, sem_ref, wvt_ref, bv_ref, wst_ref, bs_ref, out_ref,
                *, g, n_v, n_s, d_sp):
    """Processes G (visual, semantic) instances per grid step, all VMEM-resident."""
    vis = vis_ref[...]                      # [G*N_v, D_v]   compute dtype (bf16)
    sem = sem_ref[...]                      # [G*N_s, D_sp]  compute dtype, lane-padded

    # Flattened projections: big-M MXU matmuls, f32 accumulation, f32 bias add.
    vp = jnp.dot(vis, wvt_ref[...],
                 preferred_element_type=jnp.float32) + bv_ref[...]   # [G*N_v, D_sp]
    sp = jnp.dot(sem, wst_ref[...],
                 preferred_element_type=jnp.float32) + bs_ref[...]   # [G*N_s, D_sp]

    # Per-instance views for the attention part.
    vp3 = vp.reshape(g, n_v, d_sp)
    sp3 = sp.reshape(g, n_s, d_sp)
    sem3 = sem.reshape(g, n_s, d_sp)

    # scores = vp @ sp.T per instance, contracting last dims (no transpose).
    scores = jnp.einsum('gqd,gkd->gqk', vp3, sp3,
                        preferred_element_type=jnp.float32)           # [G, N_v, N_s]

    # Softmax over the last dim, all in f32 (v5e has no bf16 VPU/EUP).
    m = jnp.max(scores, axis=-1, keepdims=True)
    e = jnp.exp(scores - m)
    denom = jnp.sum(e, axis=-1, keepdims=True)
    weights = e * pl.reciprocal(denom, approx=False)   # EUP slot, exact

    # Attend over the raw (lane-padded) semantic features; padded lanes are
    # exact zeros so the 128-lane output store stays unmasked and exact.
    out = jnp.einsum('gqk,gkd->gqd', weights.astype(sem.dtype), sem3,
                     preferred_element_type=jnp.float32)              # [G, N_v, D_sp]
    out_ref[...] = out.reshape(g * n_v, d_sp).astype(out_ref.dtype)


def prepare_cma_params(wv, bv, ws, bs, compute_dtype=jnp.bfloat16):
    """One-time parameter plumbing (hoisted out of the forward path).

    wv: [D_s, D_v], bv: [D_s], ws: [D_s, D_s], bs: [D_s]  (torch nn.Linear layout)
    Returns pre-transposed ([in, out]), lane-padded, dtype-cast parameters.
    """
    d_s, d_v = wv.shape
    d_sp = max(_LANES, _round_up(d_s, _LANES))
    pad = d_sp - d_s
    wv_t = jnp.pad(wv.T, ((0, 0), (0, pad))).astype(compute_dtype)      # [D_v, D_sp]
    ws_t = jnp.pad(ws.T, ((0, pad), (0, pad))).astype(compute_dtype)    # [D_sp, D_sp]
    bv_p = jnp.pad(bv.reshape(1, -1), ((0, 0), (0, pad))).astype(jnp.float32)
    bs_p = jnp.pad(bs.reshape(1, -1), ((0, 0), (0, pad))).astype(jnp.float32)
    return dict(wv_t=wv_t, bv_p=bv_p, ws_t=ws_t, bs_p=bs_p,
                d_s=d_s, d_v=d_v, d_sp=d_sp, compute_dtype=compute_dtype)


def _choose_group_size(b, n_v, n_s, d_v, d_sp, out_bytes):
    """Instances per grid step, sized against VMEM and v7x's two TensorCores."""
    cbytes = 2  # bf16 compute inputs
    per_inst = (
        2 * cbytes * (n_v * d_v + n_s * d_sp)            # double-buffered inputs
        + 2 * out_bytes * n_v * d_sp                     # double-buffered output
        + 4 * (2 * n_v * d_sp + n_s * d_sp + 3 * n_v * n_s)  # f32 intermediates
    )
    g = max(1, min(_MAX_GROUP, _VMEM_BUDGET_BYTES // per_inst))
    # Keep >= 2 grid steps when possible so ("parallel",) splits across v7x's 2 TCs.
    if b >= 2:
        g = min(g, _round_up(b, 2) // 2)
    # Block-shape constraint: second-minor block dims (g*n_v, g*n_s) must be
    # multiples of 8 (or equal the full array dim; rounding up is always safe).
    mult = math.lcm(8 // math.gcd(8, n_v), 8 // math.gcd(8, n_s))
    return _round_up(g, mult)


def cross_modality_attention(visual_features, semantic_features, params):
    """Pallas CrossModalityAttention forward.

    visual_features:   [N_v, D_v]  or batched [B, N_v, D_v]
    semantic_features: [N_s, D_s]  or batched [B, N_s, D_s]
    params:            output of prepare_cma_params()
    returns            [N_v, D_s]  or [B, N_v, D_s]
    """
    squeeze_batch = visual_features.ndim == 2
    if squeeze_batch:
        visual_features = visual_features[None]
        semantic_features = semantic_features[None]

    b, n_v, d_v = visual_features.shape
    _, n_s, d_s_in = semantic_features.shape
    d_s, d_sp = params['d_s'], params['d_sp']
    assert d_v == params['d_v'] and d_s_in == d_s
    out_dtype = visual_features.dtype
    cdt = params['compute_dtype']

    g = _choose_group_size(b, n_v, n_s, d_v, d_sp, jnp.dtype(out_dtype).itemsize)
    num_steps = pl.cdiv(b, g)
    b_tot = num_steps * g
    b_pad = b_tot - b

    # Wrapper-side layout plumbing (cheap XLA ops): lane-pad the semantic dim,
    # pad the batch up to a multiple of G, flatten (instance, token) -> rows,
    # and cast matmul inputs to the compute dtype.
    sem = jnp.pad(semantic_features, ((0, b_pad), (0, 0), (0, d_sp - d_s)))
    vis = jnp.pad(visual_features, ((0, b_pad), (0, 0), (0, 0)))
    vis_flat = vis.reshape(b_tot * n_v, d_v).astype(cdt)
    sem_flat = sem.reshape(b_tot * n_s, d_sp).astype(cdt)

    kernel = functools.partial(_cma_kernel, g=g, n_v=n_v, n_s=n_s, d_sp=d_sp)

    out = pl.pallas_call(
        kernel,
        out_shape=jax.ShapeDtypeStruct((b_tot * n_v, d_sp), out_dtype),
        grid=(num_steps,),
        in_specs=[
            # G instances of rows per step.
            pl.BlockSpec((g * n_v, d_v), lambda i: (i, 0)),
            pl.BlockSpec((g * n_s, d_sp), lambda i: (i, 0)),
            # Shared parameters: same block every step -> stay VMEM-resident.
            pl.BlockSpec((d_v, d_sp), lambda i: (0, 0)),
            pl.BlockSpec((1, d_sp), lambda i: (0, 0)),
            pl.BlockSpec((d_sp, d_sp), lambda i: (0, 0)),
            pl.BlockSpec((1, d_sp), lambda i: (0, 0)),
        ],
        out_specs=pl.BlockSpec((g * n_v, d_sp), lambda i: (i, 0)),
        compiler_params=pltpu.CompilerParams(
            dimension_semantics=("parallel",),   # shards the batch across v7x's 2 TCs
            vmem_limit_bytes=_VMEM_LIMIT_BYTES),
    )(vis_flat, sem_flat, params['wv_t'], params['bv_p'],
      params['ws_t'], params['bs_p'])

    out = out.reshape(b_tot, n_v, d_sp)[:b, :, :d_s]   # strip batch + lane padding
    if squeeze_batch:
        out = out[0]
    return out


def _reference(vis, sem, wv, bv, ws, bs):
    vp = vis @ wv.T + bv.reshape(1, -1)
    sp = sem @ ws.T + bs.reshape(1, -1)
    scores = vp @ sp.T
    w = jax.nn.softmax(scores, axis=-1)
    return w @ sem


if __name__ == "__main__":
    # Small shapes consistent with the module's forward.
    N_V, N_S = 8, 8          # number of visual / semantic tokens
    D_V, D_S = 32, 16        # visual_feature_size, semantic_feature_size
    B = 4                    # batched instances amortizing launch overhead

    key = jax.random.PRNGKey(0)
    k_vis, k_sem, k_wv, k_bv, k_ws, k_bs = jax.random.split(key, 6)

    vis_b = jax.random.normal(k_vis, (B, N_V, D_V), dtype=jnp.float32)
    sem_b = jax.random.normal(k_sem, (B, N_S, D_S), dtype=jnp.float32)

    # Deterministic parameters (nn.Linear convention: weight [out, in]).
    wv = jax.random.normal(k_wv, (D_S, D_V), dtype=jnp.float32) * 0.1
    bv = jax.random.normal(k_bv, (D_S,), dtype=jnp.float32) * 0.1
    ws = jax.random.normal(k_ws, (D_S, D_S), dtype=jnp.float32) * 0.1
    bs = jax.random.normal(k_bs, (D_S,), dtype=jnp.float32) * 0.1

    # Parameter prep happens ONCE, outside the per-call path.
    params = prepare_cma_params(wv, bv, ws, bs, compute_dtype=jnp.bfloat16)

    # Batched call: G instances per grid step in one pallas_call.
    out_b = jax.block_until_ready(
        cross_modality_attention(vis_b, sem_b, params))
    ref_b = jax.vmap(lambda v, s: _reference(v, s, wv, bv, ws, bs))(vis_b, sem_b)
    assert out_b.shape == (B, N_V, D_S)
    # bf16 matmul inputs (f32 accumulation / softmax) -> ~1e-2 relative error.
    assert jnp.allclose(out_b, ref_b, atol=5e-2, rtol=5e-2), "batched mismatch"

    # Single-instance 2-D call (original module signature).
    out_1 = jax.block_until_ready(
        cross_modality_attention(vis_b[0], sem_b[0], params))
    assert out_1.shape == (N_V, D_S)
    assert jnp.allclose(out_1, ref_b[0], atol=5e-2, rtol=5e-2), "single mismatch"

    print("KERNEL_OK")
</pallas_src>

<mosaic_0001>
module attributes {stable_mosaic.version = 11 : i64} {
  func.func @_cma_kernel(%arg0: i32, %arg1: memref<16x32xbf16, #tpu.memory_space<vmem>>, %arg2: memref<16x128xbf16, #tpu.memory_space<vmem>>, %arg3: memref<32x128xbf16, #tpu.memory_space<vmem>>, %arg4: memref<1x128xf32, #tpu.memory_space<vmem>>, %arg5: memref<128x128xbf16, #tpu.memory_space<vmem>>, %arg6: memref<1x128xf32, #tpu.memory_space<vmem>>, %arg7: memref<16x128xf32, #tpu.memory_space<vmem>>) attributes {dimension_semantics = [#tpu.dimension_semantics<parallel>], iteration_bounds = array<i64: 2>, scalar_prefetch = 0 : i64, scratch_operands = 0 : i64, tpu.core_type = #tpu.core_type<tc>, window_params = [{transform_indices = @transform_0, window_bounds = array<i64: 16, 32>}, {transform_indices = @transform_1, window_bounds = array<i64: 16, 128>}, {pipeline_mode = #tpu.pipeline_mode<synchronous>, transform_indices = @transform_2, window_bounds = array<i64: 32, 128>}, {pipeline_mode = #tpu.pipeline_mode<synchronous>, transform_indices = @transform_3, window_bounds = array<i64: 1, 128>}, {pipeline_mode = #tpu.pipeline_mode<synchronous>, transform_indices = @transform_4, window_bounds = array<i64: 128, 128>}, {pipeline_mode = #tpu.pipeline_mode<synchronous>, transform_indices = @transform_5, window_bounds = array<i64: 1, 128>}, {transform_indices = @transform_6, window_bounds = array<i64: 16, 128>}]} {
    %c0 = arith.constant 0 : index
    %c0_0 = arith.constant 0 : index
    %0 = vector.load %arg1[%c0, %c0_0] : memref<16x32xbf16, #tpu.memory_space<vmem>>, vector<16x32xbf16>
    %c0_1 = arith.constant 0 : index
    %c0_2 = arith.constant 0 : index
    %1 = vector.load %arg2[%c0_1, %c0_2] : memref<16x128xbf16, #tpu.memory_space<vmem>>, vector<16x128xbf16>
    %c0_3 = arith.constant 0 : index
    %c0_4 = arith.constant 0 : index
    %2 = vector.load %arg3[%c0_3, %c0_4] : memref<32x128xbf16, #tpu.memory_space<vmem>>, vector<32x128xbf16>
    %cst = arith.constant dense<0.000000e+00> : vector<16x128xf32>
    %3 = tpu.matmul %0, %2, %cst {dimension_numbers = #tpu.dot_dimension_numbers<[1], [0], [0], [1], [0, 0, 1, 1], [], []>} : vector<16x32xbf16>, vector<32x128xbf16>, vector<16x128xf32> -> vector<16x128xf32>
    %c0_5 = arith.constant 0 : index
    %c0_6 = arith.constant 0 : index
    %4 = vector.load %arg4[%c0_5, %c0_6] : memref<1x128xf32, #tpu.memory_space<vmem>>, vector<1x128xf32>
    %5 = vector.broadcast %4 : vector<1x128xf32> to vector<16x128xf32>
    %6 = arith.addf %3, %5 : vector<16x128xf32>
    %c0_7 = arith.constant 0 : index
    %c0_8 = arith.constant 0 : index
    %7 = vector.load %arg5[%c0_7, %c0_8] : memref<128x128xbf16, #tpu.memory_space<vmem>>, vector<128x128xbf16>
    %cst_9 = arith.constant dense<0.000000e+00> : vector<16x128xf32>
    %8 = tpu.matmul %1, %7, %cst_9 {dimension_numbers = #tpu.dot_dimension_numbers<[1], [0], [0], [1], [0, 0, 1, 1], [], []>} : vector<16x128xbf16>, vector<128x128xbf16>, vector<16x128xf32> -> vector<16x128xf32>
    %c0_10 = arith.constant 0 : index
    %c0_11 = arith.constant 0 : index
    %9 = vector.load %arg6[%c0_10, %c0_11] : memref<1x128xf32, #tpu.memory_space<vmem>>, vector<1x128xf32>
    %10 = vector.broadcast %9 : vector<1x128xf32> to vector<16x128xf32>
    %11 = arith.addf %8, %10 : vector<16x128xf32>
    %12 = vector.shape_cast %6 : vector<16x128xf32> to vector<2x8x128xf32>
    %13 = vector.shape_cast %11 : vector<16x128xf32> to vector<2x8x128xf32>
    %14 = vector.shape_cast %1 : vector<16x128xbf16> to vector<2x8x128xbf16>
    "tpu.trace_start"() <{level = 10 : i32, message = "gqd,gkd->gqk"}> : () -> ()
    %cst_12 = arith.constant dense<0.000000e+00> : vector<2x8x8xf32>
    %15 = tpu.matmul %12, %13, %cst_12 {dimension_numbers = #tpu.dot_dimension_numbers<[2], [2], [1], [1], [0, 0, 0, 1, 1, 1], [0], [0]>} : vector<2x8x128xf32>, vector<2x8x128xf32>, vector<2x8x8xf32> -> vector<2x8x8xf32>
    "tpu.trace_stop"() : () -> ()
    %cst_13 = arith.constant dense<0xFF800000> : vector<2x8xf32>
    %16 = vector.multi_reduction <maximumf>, %15, %cst_13 [2] : vector<2x8x8xf32> to vector<2x8xf32>
    %17 = vector.shape_cast %16 : vector<2x8xf32> to vector<2x8x1xf32>
    %18 = vector.broadcast %17 : vector<2x8x1xf32> to vector<2x8x8xf32>
    %19 = arith.subf %15, %18 : vector<2x8x8xf32>
    %20 = math.exp %19 : vector<2x8x8xf32>
    %cst_14 = arith.constant dense<0.000000e+00> : vector<2x8xf32>
    %21 = vector.multi_reduction <add>, %20, %cst_14 [2] : vector<2x8x8xf32> to vector<2x8xf32>
    %22 = vector.shape_cast %21 : vector<2x8xf32> to vector<2x8x1xf32>
    %23 = tpu.reciprocal %22 : vector<2x8x1xf32> -> vector<2x8x1xf32>
    %24 = vector.broadcast %23 : vector<2x8x1xf32> to vector<2x8x8xf32>
    %25 = arith.mulf %20, %24 : vector<2x8x8xf32>
    %26 = arith.truncf %25 : vector<2x8x8xf32> to vector<2x8x8xbf16>
    "tpu.trace_start"() <{level = 10 : i32, message = "gqk,gkd->gqd"}> : () -> ()
    %cst_15 = arith.constant dense<0.000000e+00> : vector<2x8x128xf32>
    %27 = tpu.matmul %26, %14, %cst_15 {dimension_numbers = #tpu.dot_dimension_numbers<[2], [1], [1], [2], [0, 0, 0, 1, 1, 2], [0], [0]>} : vector<2x8x8xbf16>, vector<2x8x128xbf16>, vector<2x8x128xf32> -> vector<2x8x128xf32>
    "tpu.trace_stop"() : () -> ()
    %28 = vector.shape_cast %27 : vector<2x8x128xf32> to vector<16x128xf32>
    %c0_16 = arith.constant 0 : index
    %c0_17 = arith.constant 0 : index
    %29 = vector.load %arg7[%c0_16, %c0_17] : memref<16x128xf32, #tpu.memory_space<vmem>>, vector<16x128xf32>
    tpu.vector_store %arg7[%c0_16, %c0_17], %28 {strides = array<i32>} : memref<16x128xf32, #tpu.memory_space<vmem>>, vector<16x128xf32>,
    return
  }
  func.func @transform_0(%arg0: i32) -> (i32, i32) {
    %c0_i32 = arith.constant 0 : i32
    %c0_i32_0 = arith.constant 0 : i32
    return %arg0, %c0_i32 : i32, i32
  }
  func.func @transform_1(%arg0: i32) -> (i32, i32) {
    %c0_i32 = arith.constant 0 : i32
    %c0_i32_0 = arith.constant 0 : i32
    return %arg0, %c0_i32 : i32, i32
  }
  func.func @transform_2(%arg0: i32) -> (i32, i32) {
    %c0_i32 = arith.constant 0 : i32
    %c0_i32_0 = arith.constant 0 : i32
    %c0_i32_1 = arith.constant 0 : i32
    return %c0_i32, %c0_i32_0 : i32, i32
  }
  func.func @transform_3(%arg0: i32) -> (i32, i32) {
    %c0_i32 = arith.constant 0 : i32
    %c0_i32_0 = arith.constant 0 : i32
    %c0_i32_1 = arith.constant 0 : i32
    return %c0_i32, %c0_i32_0 : i32, i32
  }
  func.func @transform_4(%arg0: i32) -> (i32, i32) {
    %c0_i32 = arith.constant 0 : i32
    %c0_i32_0 = arith.constant 0 : i32
    %c0_i32_1 = arith.constant 0 : i32
    return %c0_i32, %c0_i32_0 : i32, i32
  }
  func.func @transform_5(%arg0: i32) -> (i32, i32) {
    %c0_i32 = arith.constant 0 : i32
    %c0_i32_0 = arith.constant 0 : i32
    %c0_i32_1 = arith.constant 0 : i32
    return %c0_i32, %c0_i32_0 : i32, i32
  }
  func.func @transform_6(%arg0: i32) -> (i32, i32) {
    %c0_i32 = arith.constant 0 : i32
    %c0_i32_0 = arith.constant 0 : i32
    return %arg0, %c0_i32 : i32, i32
  }
}

</mosaic_0001>

<llo_original>
// kernel: tpu_custom_call.1
$region0: #{tpu_custom_call.1}
  #allocation0 [shape = 'u32[]', space=smem, size = 0x4, offset = 0x4, fixed_abs, tag = 'smem constant byte address 0x4 - core index']
  #allocation1 [shape = 'u32[144,128]{1,0:T(1,128)}', space=vmem, size = 0x12000, scoped, tag = 'internal scratch']
  %s0 = inlined_call_operand.hbm [shape: bf16[32,32], index: 0, kind: input, shape index: {}]
  %s1 = inlined_call_operand.hbm [shape: bf16[32,128], index: 1, kind: input, shape index: {}]
  %s2 = inlined_call_operand.hbm [shape: bf16[32,128], index: 2, kind: input, shape index: {}]
  %s3 = inlined_call_operand.vmem [shape: f32[1,128], index: 3, kind: input, shape index: {}]
  %s4 = inlined_call_operand.hbm [shape: bf16[128,128], index: 4, kind: input, shape index: {}]
  %s5 = inlined_call_operand.vmem [shape: f32[1,128], index: 5, kind: input, shape index: {}]
  %s6 = inlined_call_operand.hbm [shape: f32[32,128], index: 6, kind: output, shape index: {}]
  %s7 = sld [smem:[#allocation0]]
  $region73: #{tpu_custom_call.1} parent=0
    _
  %s9 = ssub.s32 1, %s7
  %s10 = scalar_select 0, %s9, %s7
  $region1: #{tpu_custom_call.1} parent=0
    #allocation2 [shape = 'u8[8192]{0}', space=vmem, size = 0x2000, scoped, tag = 'input window, operand 0']
    #allocation3 [shape = 's32[2]{0}', space=sflag, size = 0x8, scoped, tag = 'scoped memory for tpu_custom_call.1']
    #allocation4 [shape = 's32[2]{0}', space=sflag, size = 0x8, scoped, tag = 'scoped memory for tpu_custom_call.1']
    #allocation5 [shape = 'u8[8192]{0}', space=vmem, size = 0x2000, scoped, tag = 'input window, operand 1']
    #allocation6 [shape = 's32[2]{0}', space=sflag, size = 0x8, scoped, tag = 'scoped memory for tpu_custom_call.1']
    #allocation7 [shape = 'u8[8192]{0}', space=vmem, size = 0x2000, scoped, tag = 'input window, operand 2, single buffered']
    #allocation8 [shape = 'u8[32768]{0}', space=vmem, size = 0x8000, scoped, tag = 'input window, operand 4, single buffered']
    #allocation9 [shape = 's32[1]{0}', space=sflag, size = 0x4, scoped, tag = 'scoped memory for tpu_custom_call.1']
    #allocation10 [shape = 'u8[16384]{0}', space=vmem, size = 0x4000, scoped, tag = 'output window, operand 0']
    %11 = vsyncpa [#allocation3], 0
    %s12 = scalar_lea.sflag [#allocation3], 1
    %13 = vsyncpa %s12, 0
    %14 = vsyncpa [#allocation6], 0
    %s15 = scalar_lea.sflag [#allocation6], 1
    %16 = vsyncpa %s15, 0
    %17 = vsyncpa [#allocation9], 0
    %18 = vsyncpa [#allocation4], 0
    %s19 = scalar_lea.sflag [#allocation4], 1
    %20 = vsyncpa %s19, 0
    loop: start=0, step=1, limit=4
    $region2: #{tpu_custom_call.1} parent=1 // loop_pre_header
      _
    $region3: #{tpu_custom_call.1} parent=1 // loop_header
      %s22 = sphi 0, %s26
      %p23 = scmp.ge.s32.totalorder %s22, 4
      %s32 = sphi 0, %s34
      %s35 = sphi 0, %s32
      %s36 = sphi 0, %s35
      %s52 = sphi 0, %s36
      %s58 = sphi 0, %s60
      %s61 = sphi 0, %s58
      %s62 = sphi 0, %s61
      %s78 = sphi 0, %s62
      %s82 = sphi 0, %s82
      %s84 = sphi 0, %s82
      %s85 = sphi 0, %s84
      %s99 = sphi 0, %s85
      %s103 = sphi 0, %s103
      %s105 = sphi 0, %s103
      %s106 = sphi 0, %s105
      %s120 = sphi 0, %s106
      %s124 = sphi 0, %s124
      %s126 = sphi 0, %s124
      %s127 = sphi 0, %s126
      %s141 = sphi 0, %s127
      %s145 = sphi 0, %s145
      %s147 = sphi 0, %s145
      %s148 = sphi 0, %s147
      %s162 = sphi 0, %s148
      %s168 = sphi 0, %s170
      %s171 = sphi 0, %s168
      %s172 = sphi 0, %s171
      %s188 = sphi 0, %s172
    $region4: #{tpu_custom_call.1} parent=1 // loop_header_branch
      %25 = sbr.rel (%p23) target = $region8
    $region5: #{tpu_custom_call.1} parent=1 // loop_body
      %s27 = ssub.s32 %s22, 1
      %s28 = ssub.s32 %s22, 2
      %s29 = sadd.s32 %s22, 1
      %s30 = ssub.s32 %s22, %s29
      %p31 = scmp.eq.s32.totalorder %s30, 0
      %s33 = sadd.s32 %s32, 1
      %s34 = scalar_select %p31, %s32, %s33
      %p37 = pneg %p31
      %p38 = scmp.eq.s32.totalorder %s22, 1
      %p39 = por %p37, %p38
      %p40 = scmp.ne.s32.totalorder %s32, %s35
      %p41 = scmp.eq.s32.totalorder %s22, 0
      %p42 = por %p40, %p41
      %p43 = scmp.ne.s32.totalorder %s32, %s35
      %p44 = scmp.eq.s32.totalorder %s27, 1
      %p45 = por %p43, %p44
      %p46 = scmp.ne.s32.totalorder %s35, %s36
      %p47 = scmp.eq.s32.totalorder %s27, 0
      %p48 = por %p46, %p47
      %p49 = scmp.ne.s32.totalorder %s35, %s36
      %p50 = scmp.eq.s32.totalorder %s28, 1
      %p51 = por %p49, %p50
      %p53 = scmp.ne.s32.totalorder %s36, %s52
      %p54 = scmp.eq.s32.totalorder %s28, 0
      %p55 = por %p53, %p54
      %s56 = ssub.s32 %s22, %s29
      %p57 = scmp.eq.s32.totalorder %s56, 0
      %s59 = sadd.s32 %s58, 1
      %s60 = scalar_select %p57, %s58, %s59
      %p63 = pneg %p57
      %p64 = scmp.eq.s32.totalorder %s22, 1
      %p65 = por %p63, %p64
      %p66 = scmp.ne.s32.totalorder %s58, %s61
      %p67 = scmp.eq.s32.totalorder %s22, 0
      %p68 = por %p66, %p67
      %p69 = scmp.ne.s32.totalorder %s58, %s61
      %p70 = scmp.eq.s32.totalorder %s27, 1
      %p71 = por %p69, %p70
      %p72 = scmp.ne.s32.totalorder %s61, %s62
      %p73 = scmp.eq.s32.totalorder %s27, 0
      %p74 = por %p72, %p73
      %p75 = scmp.ne.s32.totalorder %s61, %s62
      %p76 = scmp.eq.s32.totalorder %s28, 1
      %p77 = por %p75, %p76
      %p79 = scmp.ne.s32.totalorder %s62, %s78
      %p80 = scmp.eq.s32.totalorder %s28, 0
      %p81 = por %p79, %p80
      %s83 = sadd.s32 %s82, 1
      %p86 = scmp.eq.s32.totalorder %s22, 1
      %p87 = scmp.ne.s32.totalorder %s82, %s84
      %p88 = scmp.eq.s32.totalorder %s22, 0
      %p89 = por %p87, %p88
      %p90 = scmp.ne.s32.totalorder %s82, %s84
      %p91 = scmp.eq.s32.totalorder %s27, 1
      %p92 = por %p90, %p91
      %p93 = scmp.ne.s32.totalorder %s84, %s85
      %p94 = scmp.eq.s32.totalorder %s27, 0
      %p95 = por %p93, %p94
      %p96 = scmp.ne.s32.totalorder %s84, %s85
      %p97 = scmp.eq.s32.totalorder %s28, 1
      %p98 = por %p96, %p97
      %p100 = scmp.ne.s32.totalorder %s85, %s99
      %p101 = scmp.eq.s32.totalorder %s28, 0
      %p102 = por %p100, %p101
      %s104 = sadd.s32 %s103, 1
      %p107 = scmp.eq.s32.totalorder %s22, 1
      %p108 = scmp.ne.s32.totalorder %s103, %s105
      %p109 = scmp.eq.s32.totalorder %s22, 0
      %p110 = por %p108, %p109
      %p111 = scmp.ne.s32.totalorder %s103, %s105
      %p112 = scmp.eq.s32.totalorder %s27, 1
      %p113 = por %p111, %p112
      %p114 = scmp.ne.s32.totalorder %s105, %s106
      %p115 = scmp.eq.s32.totalorder %s27, 0
      %p116 = por %p114, %p115
      %p117 = scmp.ne.s32.totalorder %s105, %s106
      %p118 = scmp.eq.s32.totalorder %s28, 1
      %p119 = por %p117, %p118
      %p121 = scmp.ne.s32.totalorder %s106, %s120
      %p122 = scmp.eq.s32.totalorder %s28, 0
      %p123 = por %p121, %p122
      %s125 = sadd.s32 %s124, 1
      %p128 = scmp.eq.s32.totalorder %s22, 1
      %p129 = scmp.ne.s32.totalorder %s124, %s126
      %p130 = scmp.eq.s32.totalorder %s22, 0
      %p131 = por %p129, %p130
      %p132 = scmp.ne.s32.totalorder %s124, %s126
      %p133 = scmp.eq.s32.totalorder %s27, 1
      %p134 = por %p132, %p133
      %p135 = scmp.ne.s32.totalorder %s126, %s127
      %p136 = scmp.eq.s32.totalorder %s27, 0
      %p137 = por %p135, %p136
      %p138 = scmp.ne.s32.totalorder %s126, %s127
      %p139 = scmp.eq.s32.totalorder %s28, 1
      %p140 = por %p138, %p139
      %p142 = scmp.ne.s32.totalorder %s127, %s141
      %p143 = scmp.eq.s32.totalorder %s28, 0
      %p144 = por %p142, %p143
      %s146 = sadd.s32 %s145, 1
      %p149 = scmp.eq.s32.totalorder %s22, 1
      %p150 = scmp.ne.s32.totalorder %s145, %s147
      %p151 = scmp.eq.s32.totalorder %s22, 0
      %p152 = por %p150, %p151
      %p153 = scmp.ne.s32.totalorder %s145, %s147
      %p154 = scmp.eq.s32.totalorder %s27, 1
      %p155 = por %p153, %p154
      %p156 = scmp.ne.s32.totalorder %s147, %s148
      %p157 = scmp.eq.s32.totalorder %s27, 0
      %p158 = por %p156, %p157
      %p159 = scmp.ne.s32.totalorder %s147, %s148
      %p160 = scmp.eq.s32.totalorder %s28, 1
      %p161 = por %p159, %p160
      %p163 = scmp.ne.s32.totalorder %s148, %s162
      %p164 = scmp.eq.s32.totalorder %s28, 0
      %p165 = por %p163, %p164
      %s166 = ssub.s32 %s22, %s29
      %p167 = scmp.eq.s32.totalorder %s166, 0
      %s169 = sadd.s32 %s168, 1
      %s170 = scalar_select %p167, %s168, %s169
      %p173 = pneg %p167
      %p174 = scmp.eq.s32.totalorder %s22, 1
      %p175 = por %p173, %p174
      %p176 = scmp.ne.s32.totalorder %s168, %s171
      %p177 = scmp.eq.s32.totalorder %s22, 0
      %p178 = por %p176, %p177
      %p179 = scmp.ne.s32.totalorder %s168, %s171
      %p180 = scmp.eq.s32.totalorder %s27, 1
      %p181 = por %p179, %p180
      %p182 = scmp.ne.s32.totalorder %s171, %s172
      %p183 = scmp.eq.s32.totalorder %s27, 0
      %p184 = por %p182, %p183
      %p185 = scmp.ne.s32.totalorder %s171, %s172
      %p186 = scmp.eq.s32.totalorder %s28, 1
      %p187 = por %p185, %p186
      %p189 = scmp.ne.s32.totalorder %s172, %s188
      %p190 = scmp.eq.s32.totalorder %s28, 0
      %p191 = por %p189, %p190
      %p192 = scmp.le.s32.totalorder 1, %s22
      %p193 = scmp.lt.s32.totalorder %s22, 3
      %p194 = pnand %p192, %p193
      %p195 = pneg %p194
      // Predicated region
      $region9: #{tpu_custom_call.1} parent=5 // pred_check
        _
      $region10: #{tpu_custom_call.1} parent=5 // pred_check_branch
        %197 = sbr.rel (%p194) target = $region12
      $region11: #{tpu_custom_call.1} parent=5 // pred_region
        %s198 = ssub.s32 %s22, 1
        // Predicated region
        $region13: #{tpu_custom_call.1} parent=11 // pred_check
          %p199 = pneg %p95
        $region14: #{tpu_custom_call.1} parent=11 // pred_check_branch
          %201 = sbr.rel (%p199) target = $region16
        $region15: #{tpu_custom_call.1} parent=11 // pred_region
          %s203 = ssub.s32 256, 256
          %204 = vsyncadd [#allocation6], %s203
          %s205 = sshll.u32 [#allocation7], 4
          %s206 = int_to_ptr.vmem [resolvable:$true] %s205
          %211 = dma.hbm_to_vmem [thread:$0]  %s2, 256, %s206, [#allocation6], 64, 64, 4
        $region16: #{tpu_custom_call.1} parent=11 // pred_fallthru
          _
        // Predicated region
        $region17: #{tpu_custom_call.1} parent=11 // pred_check
          %p212 = pneg %p116
        $region18: #{tpu_custom_call.1} parent=11 // pred_check_branch
          %214 = sbr.rel (%p212) target = $region20
        $region19: #{tpu_custom_call.1} parent=11 // pred_region
          _
        $region20: #{tpu_custom_call.1} parent=11 // pred_fallthru
          _
        // Predicated region
        $region21: #{tpu_custom_call.1} parent=11 // pred_check
          %p215 = pneg %p137
        $region22: #{tpu_custom_call.1} parent=11 // pred_check_branch
          %217 = sbr.rel (%p215) target = $region24
        $region23: #{tpu_custom_call.1} parent=11 // pred_region
          %s219 = ssub.s32 1024, 1024
          %220 = vsyncadd [#allocation9], %s219
          %s221 = sshll.u32 [#allocation8], 4
          %s222 = int_to_ptr.vmem [resolvable:$true] %s221
          %227 = dma.hbm_to_vmem [thread:$0]  %s4, 1024, %s222, [#allocation9], 64, 64, 4
        $region24: #{tpu_custom_call.1} parent=11 // pred_fallthru
          _
        // Predicated region
        $region25: #{tpu_custom_call.1} parent=11 // pred_check
          %p228 = pneg %p158
        $region26: #{tpu_custom_call.1} parent=11 // pred_check_branch
          %230 = sbr.rel (%p228) target = $region28
        $region27: #{tpu_custom_call.1} parent=11 // pred_region
          _
        $region28: #{tpu_custom_call.1} parent=11 // pred_fallthru
          _
      $region12: #{tpu_custom_call.1} parent=5 // pred_fallthru
        _
      %p231 = scmp.lt.s32.totalorder %s22, 2
      // Predicated region
      $region29: #{tpu_custom_call.1} parent=5 // pred_check
        %p232 = pneg %p231
      $region30: #{tpu_custom_call.1} parent=5 // pred_check_branch
        %234 = sbr.rel (%p232) target = $region32
      $region31: #{tpu_custom_call.1} parent=5 // pred_region
        // Predicated region
        $region33: #{tpu_custom_call.1} parent=31 // pred_check
          %p235 = pneg %p42
        $region34: #{tpu_custom_call.1} parent=31 // pred_check_branch
          %237 = sbr.rel (%p235) target = $region36
        $region35: #{tpu_custom_call.1} parent=31 // pred_region
          %s238 = sand.u32 %s32, 1
          %s239 = scalar_lea.sflag [#allocation3], %s238
          %s240 = sand.u32 %s32, 1
          %s241 = smul.addr %s240, 8
          %s242 = scalar_lea.vmem [#allocation2], %s241
          %s243 = smul.u32 2, %s22
          %s245 = ssub.s32 128, 128
          %246 = vsyncadd %s239, %s245
          %s247 = smul.addr %s243, 64
          %s248 = scalar_lea.hbm %s0, %s247
          %s249 = sshll.u32 %s242, 4
          %s250 = int_to_ptr.vmem [resolvable:$true] %s249
          %255 = dma.hbm_to_vmem [thread:$0]  %s248, 128, %s250, %s239, 64, 64, 4
        $region36: #{tpu_custom_call.1} parent=31 // pred_fallthru
          _
        // Predicated region
        $region37: #{tpu_custom_call.1} parent=31 // pred_check
          %p256 = pneg %p68
        $region38: #{tpu_custom_call.1} parent=31 // pred_check_branch
          %258 = sbr.rel (%p256) target = $region40
        $region39: #{tpu_custom_call.1} parent=31 // pred_region
          %s259 = sand.u32 %s22, 1
          %s260 = scalar_lea.sflag [#allocation6], %s259
          %s261 = sand.u32 %s58, 1
          %s262 = smul.addr %s261, 8
          %s263 = scalar_lea.vmem [#allocation5], %s262
          %s264 = smul.u32 2, %s22
          %s266 = ssub.s32 128, 128
          %267 = vsyncadd %s260, %s266
          %s268 = smul.addr %s264, 64
          %s269 = scalar_lea.hbm %s1, %s268
          %s270 = sshll.u32 %s263, 4
          %s271 = int_to_ptr.vmem [resolvable:$true] %s270
          %276 = dma.hbm_to_vmem [thread:$0]  %s269, 128, %s271, %s260, 64, 64, 4
        $region40: #{tpu_custom_call.1} parent=31 // pred_fallthru
          _
      $region32: #{tpu_custom_call.1} parent=5 // pred_fallthru
        _
      %p277 = scmp.le.s32.totalorder 1, %s22
      %p278 = scmp.lt.s32.totalorder %s22, 3
      %p279 = pnand %p277, %p278
      %p280 = pneg %p279
      // Predicated region
      $region41: #{tpu_custom_call.1} parent=5 // pred_check
        _
      $region42: #{tpu_custom_call.1} parent=5 // pred_check_branch
        %282 = sbr.rel (%p279) target = $region44
      $region43: #{tpu_custom_call.1} parent=5 // pred_region
        %s283 = ssub.s32 %s22, 1
        %s284 = sand.u32 %s35, 1
        %s285 = scalar_lea.sflag [#allocation3], %s284
        %s286 = sand.u32 %s35, 1
        %s287 = smul.addr %s286, 8
        %s288 = scalar_lea.vmem [#allocation2], %s287
        // Predicated region
        $region45: #{tpu_custom_call.1} parent=43 // pred_check
          %p289 = pneg %p48
        $region46: #{tpu_custom_call.1} parent=43 // pred_check_branch
          %291 = sbr.rel (%p289) target = $region48
        $region47: #{tpu_custom_call.1} parent=43 // pred_region
          %292 = dma.done %s285, 128
        $region48: #{tpu_custom_call.1} parent=43 // pred_fallthru
          _
        %s293 = sand.u32 %s27, 1
        %s294 = scalar_lea.sflag [#allocation6], %s293
        %s295 = sand.u32 %s61, 1
        %s296 = smul.addr %s295, 8
        %s297 = scalar_lea.vmem [#allocation5], %s296
        // Predicated region
        $region49: #{tpu_custom_call.1} parent=43 // pred_check
          %p298 = pneg %p74
        $region50: #{tpu_custom_call.1} parent=43 // pred_check_branch
          %300 = sbr.rel (%p298) target = $region52
        $region51: #{tpu_custom_call.1} parent=43 // pred_region
          %301 = dma.done %s294, 128
        $region52: #{tpu_custom_call.1} parent=43 // pred_fallthru
          _
        // Predicated region
        $region53: #{tpu_custom_call.1} parent=43 // pred_check
          %p302 = pneg %p95
        $region54: #{tpu_custom_call.1} parent=43 // pred_check_branch
          %304 = sbr.rel (%p302) target = $region56
        $region55: #{tpu_custom_call.1} parent=43 // pred_region
          %305 = dma.done [#allocation6], 256
        $region56: #{tpu_custom_call.1} parent=43 // pred_fallthru
          _
        // Predicated region
        $region57: #{tpu_custom_call.1} parent=43 // pred_check
          %p306 = pneg %p137
        $region58: #{tpu_custom_call.1} parent=43 // pred_check_branch
          %308 = sbr.rel (%p306) target = $region60
        $region59: #{tpu_custom_call.1} parent=43 // pred_region
          %309 = dma.done [#allocation9], 1024
        $region60: #{tpu_custom_call.1} parent=43 // pred_fallthru
          _
        %s310 = sand.u32 %s35, 1
        %s311 = scalar_lea.sflag [#allocation3], %s310
        %s312 = sand.u32 %s35, 1
        %s313 = smul.addr %s312, 8
        %s314 = scalar_lea.vmem [#allocation2], %s313
        %p315 = pneg %p48
        %p316 = pneg %p45
        %s317 = sand.u32 %s27, 1
        %s318 = scalar_lea.sflag [#allocation6], %s317
        %s319 = sand.u32 %s61, 1
        %s320 = smul.addr %s319, 8
        %s321 = scalar_lea.vmem [#allocation5], %s320
        %p322 = pneg %p74
        %p323 = pneg %p71
        %p324 = pneg %p95
        %p325 = pneg %p92
        %p326 = pneg %p116
        %p327 = pneg %p113
        %p328 = pneg %p137
        %p329 = pneg %p134
        %p330 = pneg %p158
        %p331 = pneg %p155
        %p332 = pneg %p184
        %p333 = pneg %p181
        %s334 = sand.u32 %s171, 1
        %s335 = scalar_lea.sflag [#allocation4], %s334
        %s336 = sand.u32 %s171, 1
        %s337 = smul.addr %s336, 16
        %s338 = scalar_lea.vmem [#allocation10], %s337
        %s339 = smul.u32 2, %s27
        %s340 = smul.u32 2, %s27
        %s341 = smul.u32 2, %s27
        %v343 = vld [vmem:[%s288] sm:$0xf]
        %v344 = vld [vmem:[%s288 + $0x4] sm:$0xf]
        %v345 = vld [vmem:[%s297] sm:$0xf]
        %v346 = vld [vmem:[%s297 + $0x4] sm:$0xf]
        %v347 = vld [vmem:[#allocation7] sm:$0xf]
        %v348 = vld [vmem:[#allocation7 + $0x4] sm:$0xf]
        %v349 = vld [vmem:[#allocation7 + $0x8] sm:$0xf]
        %v350 = vld [vmem:[#allocation7 + $0xc] sm:$0xf]
        %v351 = vld [vmem:[%s3] sm:$0x1]
        %v353 = vlaneseq
        %v354 = vshrl.u32 %v353, 7
        %v355 = vsub.s32 0, %v354
        %v356 = vrot.slane %v351, %v355
        %v360 = vunpack.c.l.b16 %v343
        %v361 = vunpack.c.l.b16 %v344
        %v362 = vpack.c.b16 %v361, %v360
        %v367 = vunpack.c.l.b16 %v347
        %v368 = vunpack.c.l.b16 %v348
        %v369 = vunpack.c.l.b16 %v349
        %v370 = vunpack.c.l.b16 %v350
        %v371 = vpack.c.b16 %v368, %v367
        %v372 = vpack.c.b16 %v370, %v369
        %vm375 = vcmask 261120
        %v377 = vsel %vm375, %v362, 0
        %379 = vmatprep.subr.bf16.mxu0 0
        %380 = vmatpush1.bf16.msra.mxu0 0
        %381 = vmatprep.subr.bf16.mxu0 0
        %382 = vmatpush1.bf16.msra.mxu0 0
        %383 = vmatprep.subr.bf16.mxu0 0
        %384 = vmatpush1.bf16.msra.mxu0 0
        %385 = vmatprep.subr.bf16.mxu0 0
        %386 = vmatpush1.bf16.msra.mxu0 0
        %387 = vmatprep.subr.bf16.mxu0 0
        %388 = vmatpush1.bf16.msra.mxu0 0
        %389 = vmatprep.subr.bf16.mxu0 0
        %390 = vmatpush1.bf16.msra.mxu0 0
        %391 = vmatprep.subr.bf16.mxu0 0
        %392 = vmatpush1.bf16.msra.mxu0 %v372
        %393 = vmatprep.subr.bf16.mxu0 0
        %394 = vmatpush1.bf16.msra.mxu0 %v371
        %395 = vmatprep.subr.bf16.mxu0 0
        %396 = vmatpush2.bf16.msra.mxu0 0
        %397 = vmatprep.subr.bf16.mxu0 0
        %398 = vmatpush2.bf16.msra.mxu0 0
        %399 = vmatprep.subr.bf16.mxu0 0
        %400 = vmatpush2.bf16.msra.mxu0 0
        %401 = vmatprep.subr.bf16.mxu0 0
        %402 = vmatpush2.bf16.msra.mxu0 0
        %403 = vmatprep.subr.bf16.mxu0 0
        %404 = vmatpush2.bf16.msra.mxu0 0
        %405 = vmatprep.subr.bf16.mxu0 0
        %406 = vmatpush2.bf16.msra.mxu0 0
        %407 = vmatprep.subr.bf16.mxu0 0
        %408 = vmatpush2.bf16.msra.mxu0 0
        %409 = vmatprep.subr.bf16.mxu0 0
        %410 = vmatpush2.bf16.msra.mxu0 0
        %411 = vmatprep.mubr.bf16.mxu0 0
        %412 = vmatmul.mubr.bf16.gmra.mxu0 %v377
        %v413 = vpop.f32.mrf.mxu0
        %v414 = vadd.f32 %v356, %v413
        %v415 = vpop.f32.mrf.mxu0
        %v416 = vpop.f32.mrf.mxu0
        %v417 = vadd.f32 %v356, %v416
        %v418 = vpop.f32.mrf.mxu0
        %419 = vdwg.mxu0
        %v420 = vld [vmem:[#allocation8] sm:$0xf]
        %v421 = vld [vmem:[#allocation8 + $0x4] sm:$0xf]
        %v422 = vld [vmem:[#allocation8 + $0x8] sm:$0xf]
        %v423 = vld [vmem:[#allocation8 + $0xc] sm:$0xf]
        %v424 = vld [vmem:[#allocation8 + $0x10] sm:$0xf]
        %v425 = vld [vmem:[#allocation8 + $0x14] sm:$0xf]
        %v426 = vld [vmem:[#allocation8 + $0x18] sm:$0xf]
        %v427 = vld [vmem:[#allocation8 + $0x1c] sm:$0xf]
        %v428 = vld [vmem:[#allocation8 + $0x20] sm:$0xf]
        %v429 = vld [vmem:[#allocation8 + $0x24] sm:$0xf]
        %v430 = vld [vmem:[#allocation8 + $0x28] sm:$0xf]
        %v431 = vld [vmem:[#allocation8 + $0x2c] sm:$0xf]
        %v432 = vld [vmem:[#allocation8 + $0x30] sm:$0xf]
        %v433 = vld [vmem:[#allocation8 + $0x34] sm:$0xf]
        %v434 = vld [vmem:[#allocation8 + $0x38] sm:$0xf]
        %v435 = vld [vmem:[#allocation8 + $0x3c] sm:$0xf]
        %v436 = vld [vmem:[%s5] sm:$0x1]
        %v438 = vlaneseq
        %v439 = vshrl.u32 %v438, 7
        %v440 = vsub.s32 0, %v439
        %v441 = vrot.slane %v436, %v440
        %v445 = vunpack.c.l.b16 %v345
        %v446 = vunpack.c.l.b16 %v346
        %v447 = vpack.c.b16 %v446, %v445
        %v465 = vunpack.c.l.b16 %v420
        %v466 = vunpack.c.l.b16 %v421
        %v467 = vunpack.c.l.b16 %v422
        %v468 = vunpack.c.l.b16 %v423
        %v469 = vunpack.c.l.b16 %v424
        %v470 = vunpack.c.l.b16 %v425
        %v471 = vunpack.c.l.b16 %v426
        %v472 = vunpack.c.l.b16 %v427
        %v473 = vunpack.c.l.b16 %v428
        %v474 = vunpack.c.l.b16 %v429
        %v475 = vunpack.c.l.b16 %v430
        %v476 = vunpack.c.l.b16 %v431
        %v477 = vunpack.c.l.b16 %v432
        %v478 = vunpack.c.l.b16 %v433
        %v479 = vunpack.c.l.b16 %v434
        %v480 = vunpack.c.l.b16 %v435
        %v481 = vpack.c.b16 %v466, %v465
        %v482 = vpack.c.b16 %v468, %v467
        %v483 = vpack.c.b16 %v470, %v469
        %v484 = vpack.c.b16 %v472, %v471
        %v485 = vpack.c.b16 %v474, %v473
        %v486 = vpack.c.b16 %v476, %v475
        %v487 = vpack.c.b16 %v478, %v477
        %v488 = vpack.c.b16 %v480, %v479
        %497 = vmatprep.subr.bf16.mxu0 0
        %498 = vmatpush1.bf16.msra.mxu0 %v488
        %499 = vmatprep.subr.bf16.mxu0 0
        %500 = vmatpush1.bf16.msra.mxu0 %v487
        %501 = vmatprep.subr.bf16.mxu0 0
        %502 = vmatpush1.bf16.msra.mxu0 %v486
        %503 = vmatprep.subr.bf16.mxu0 0
        %504 = vmatpush1.bf16.msra.mxu0 %v485
        %505 = vmatprep.subr.bf16.mxu0 0
        %506 = vmatpush1.bf16.msra.mxu0 %v484
        %507 = vmatprep.subr.bf16.mxu0 0
        %508 = vmatpush1.bf16.msra.mxu0 %v483
        %509 = vmatprep.subr.bf16.mxu0 0
        %510 = vmatpush1.bf16.msra.mxu0 %v482
        %511 = vmatprep.subr.bf16.mxu0 0
        %512 = vmatpush1.bf16.msra.mxu0 %v481
        %513 = vmatprep.subr.bf16.mxu0 0
        %514 = vmatpush2.bf16.msra.mxu0 0
        %515 = vmatprep.subr.bf16.mxu0 0
        %516 = vmatpush2.bf16.msra.mxu0 0
        %517 = vmatprep.subr.bf16.mxu0 0
        %518 = vmatpush2.bf16.msra.mxu0 0
        %519 = vmatprep.subr.bf16.mxu0 0
        %520 = vmatpush2.bf16.msra.mxu0 0
        %521 = vmatprep.subr.bf16.mxu0 0
        %522 = vmatpush2.bf16.msra.mxu0 0
        %523 = vmatprep.subr.bf16.mxu0 0
        %524 = vmatpush2.bf16.msra.mxu0 0
        %525 = vmatprep.subr.bf16.mxu0 0
        %526 = vmatpush2.bf16.msra.mxu0 0
        %527 = vmatprep.subr.bf16.mxu0 0
        %528 = vmatpush2.bf16.msra.mxu0 0
        %529 = vmatprep.mubr.bf16.mxu0 0
        %530 = vmatmul.mubr.bf16.gmra.mxu0 %v447
        %v531 = vpop.f32.mrf.mxu0
        %v532 = vadd.f32 %v441, %v531
        %v533 = vpop.f32.mrf.mxu0
        %v534 = vpop.f32.mrf.mxu0
        %v535 = vadd.f32 %v441, %v534
        %v536 = vpop.f32.mrf.mxu0
        %537 = vdwg.mxu0
        %538 = vmatprep.subr.mxu0 0.0
        %539 = vmatpush1.xpose.msra.mxu0 0.0
        %540 = vmatprep.subr.mxu0 0.0
        %541 = vmatpush1.xpose.msra.mxu0 0.0
        %542 = vmatprep.subr.mxu0 0.0
        %543 = vmatpush1.xpose.msra.mxu0 0.0
        %544 = vmatprep.subr.mxu0 0.0
        %545 = vmatpush1.xpose.msra.mxu0 0.0
        %546 = vmatprep.subr.mxu0 0.0
        %547 = vmatpush1.xpose.msra.mxu0 0.0
        %548 = vmatprep.subr.mxu0 0.0
        %549 = vmatpush1.xpose.msra.mxu0 0.0
        %550 = vmatprep.subr.mxu0 0.0
        %551 = vmatpush1.xpose.msra.mxu0 0.0
        %552 = vmatprep.subr.mxu0 0.0
        %553 = vmatpush1.xpose.msra.mxu0 0.0
        %554 = vmatprep.subr.mxu0 0.0
        %555 = vmatpush1.xpose.msra.mxu0 0.0
        %556 = vmatprep.subr.mxu0 0.0
        %557 = vmatpush1.xpose.msra.mxu0 0.0
        %558 = vmatprep.subr.mxu0 0.0
        %559 = vmatpush1.xpose.msra.mxu0 0.0
        %560 = vmatprep.subr.mxu0 0.0
        %561 = vmatpush1.xpose.msra.mxu0 0.0
        %562 = vmatprep.subr.mxu0 0.0
        %563 = vmatpush1.xpose.msra.mxu0 0.0
        %564 = vmatprep.subr.mxu0 0.0
        %565 = vmatpush1.xpose.msra.mxu0 0.0
        %566 = vmatprep.subr.mxu0 0.0
        %567 = vmatpush1.xpose.msra.mxu0 0.0
        %568 = vmatprep.subr.mxu0 0.0
        %569 = vmatpush1.xpose.msra.mxu0 %v532
        %570 = vmatprep.subr.mxu0 0.0
        %571 = vmatpush2.xpose.msra.mxu0 0.0
        %572 = vmatprep.subr.mxu0 0.0
        %573 = vmatpush2.xpose.msra.mxu0 0.0
        %574 = vmatprep.subr.mxu0 0.0
        %575 = vmatpush2.xpose.msra.mxu0 0.0
        %576 = vmatprep.subr.mxu0 0.0
        %577 = vmatpush2.xpose.msra.mxu0 0.0
        %578 = vmatprep.subr.mxu0 0.0
        %579 = vmatpush2.xpose.msra.mxu0 0.0
        %580 = vmatprep.subr.mxu0 0.0
        %581 = vmatpush2.xpose.msra.mxu0 0.0
        %582 = vmatprep.subr.mxu0 0.0
        %583 = vmatpush2.xpose.msra.mxu0 0.0
        %584 = vmatprep.subr.mxu0 0.0
        %585 = vmatpush2.xpose.msra.mxu0 0.0
        %586 = vmatprep.subr.mxu0 0.0
        %587 = vmatpush2.xpose.msra.mxu0 0.0
        %588 = vmatprep.subr.mxu0 0.0
        %589 = vmatpush2.xpose.msra.mxu0 0.0
        %590 = vmatprep.subr.mxu0 0.0
        %591 = vmatpush2.xpose.msra.mxu0 0.0
        %592 = vmatprep.subr.mxu0 0.0
        %593 = vmatpush2.xpose.msra.mxu0 0.0
        %594 = vmatprep.subr.mxu0 0.0
        %595 = vmatpush2.xpose.msra.mxu0 0.0
        %596 = vmatprep.subr.mxu0 0.0
        %597 = vmatpush2.xpose.msra.mxu0 0.0
        %598 = vmatprep.subr.mxu0 0.0
        %599 = vmatpush2.xpose.msra.mxu0 0.0
        %600 = vmatprep.subr.mxu0 0.0
        %601 = vmatpush2.xpose.msra.mxu0 0.0
        %602 = vmatprep.mubr.f32.mxu0 0.0
        %603 = vmatmul.mubr.f32.gmra.mxu0 %v414
        %v604 = vpop.f32.mrf.mxu0
        %v605 = vadd.f32 0.0, %v604
        %v606 = vpop.f32.mrf.mxu0
        %607 = vdwg.mxu0
        %608 = vmatprep.subr.mxu0 0.0
        %609 = vmatpush1.xpose.msra.mxu0 0.0
        %610 = vmatprep.subr.mxu0 0.0
        %611 = vmatpush1.xpose.msra.mxu0 0.0
        %612 = vmatprep.subr.mxu0 0.0
        %613 = vmatpush1.xpose.msra.mxu0 0.0
        %614 = vmatprep.subr.mxu0 0.0
        %615 = vmatpush1.xpose.msra.mxu0 0.0
        %616 = vmatprep.subr.mxu0 0.0
        %617 = vmatpush1.xpose.msra.mxu0 0.0
        %618 = vmatprep.subr.mxu0 0.0
        %619 = vmatpush1.xpose.msra.mxu0 0.0
        %620 = vmatprep.subr.mxu0 0.0
        %621 = vmatpush1.xpose.msra.mxu0 0.0
        %622 = vmatprep.subr.mxu0 0.0
        %623 = vmatpush1.xpose.msra.mxu0 0.0
        %624 = vmatprep.subr.mxu0 0.0
        %625 = vmatpush1.xpose.msra.mxu0 0.0
        %626 = vmatprep.subr.mxu0 0.0
        %627 = vmatpush1.xpose.msra.mxu0 0.0
        %628 = vmatprep.subr.mxu0 0.0
        %629 = vmatpush1.xpose.msra.mxu0 0.0
        %630 = vmatprep.subr.mxu0 0.0
        %631 = vmatpush1.xpose.msra.mxu0 0.0
        %632 = vmatprep.subr.mxu0 0.0
        %633 = vmatpush1.xpose.msra.mxu0 0.0
        %634 = vmatprep.subr.mxu0 0.0
        %635 = vmatpush1.xpose.msra.mxu0 0.0
        %636 = vmatprep.subr.mxu0 0.0
        %637 = vmatpush1.xpose.msra.mxu0 0.0
        %638 = vmatprep.subr.mxu0 0.0
        %639 = vmatpush1.xpose.msra.mxu0 %v535
        %640 = vmatprep.subr.mxu0 0.0
        %641 = vmatpush2.xpose.msra.mxu0 0.0
        %642 = vmatprep.subr.mxu0 0.0
        %643 = vmatpush2.xpose.msra.mxu0 0.0
        %644 = vmatprep.subr.mxu0 0.0
        %645 = vmatpush2.xpose.msra.mxu0 0.0
        %646 = vmatprep.subr.mxu0 0.0
        %647 = vmatpush2.xpose.msra.mxu0 0.0
        %648 = vmatprep.subr.mxu0 0.0
        %649 = vmatpush2.xpose.msra.mxu0 0.0
        %650 = vmatprep.subr.mxu0 0.0
        %651 = vmatpush2.xpose.msra.mxu0 0.0
        %652 = vmatprep.subr.mxu0 0.0
        %653 = vmatpush2.xpose.msra.mxu0 0.0
        %654 = vmatprep.subr.mxu0 0.0
        %655 = vmatpush2.xpose.msra.mxu0 0.0
        %656 = vmatprep.subr.mxu0 0.0
        %657 = vmatpush2.xpose.msra.mxu0 0.0
        %658 = vmatprep.subr.mxu0 0.0
        %659 = vmatpush2.xpose.msra.mxu0 0.0
        %660 = vmatprep.subr.mxu0 0.0
        %661 = vmatpush2.xpose.msra.mxu0 0.0
        %662 = vmatprep.subr.mxu0 0.0
        %663 = vmatpush2.xpose.msra.mxu0 0.0
        %664 = vmatprep.subr.mxu0 0.0
        %665 = vmatpush2.xpose.msra.mxu0 0.0
        %666 = vmatprep.subr.mxu0 0.0
        %667 = vmatpush2.xpose.msra.mxu0 0.0
        %668 = vmatprep.subr.mxu0 0.0
        %669 = vmatpush2.xpose.msra.mxu0 0.0
        %670 = vmatprep.subr.mxu0 0.0
        %671 = vmatpush2.xpose.msra.mxu0 0.0
        %672 = vmatprep.mubr.f32.mxu0 0.0
        %673 = vmatmul.mubr.f32.gmra.mxu0 %v417
        %v674 = vpop.f32.mrf.mxu0
        %v675 = vadd.f32 0.0, %v674
        %v676 = vpop.f32.mrf.mxu0
        %677 = vdwg.mxu0
        %vm678 = vcmask 64512
        %v679 = vsel %vm678, %v605, -inf
        %680 = vmax.xlane.f32.xlu0 %v679
        %v681 = vpop.xlane.xlu0 %680
        %v682 = vsel %vm678, %v675, -inf
        %683 = vmax.xlane.f32.xlu0 %v682
        %v684 = vpop.xlane.xlu0 %683
        %v685 = vsub.f32 %v605, %v681
        %v686 = vsub.f32 %v675, %v684
        %v687 = vmul.f32 %v685, 1.442695
        %v688 = vpow.pop %v687
        %v689 = vmul.f32 %v686, 1.442695
        %v690 = vpow.pop %v689
        %v691 = vsel %vm678, %v688, 0.0
        %692 = vadd.xlane.f32.xlu0 %v691
        %v693 = vpop.xlane.xlu0 %692
        %v694 = vsel %vm678, %v690, 0.0
        %695 = vadd.xlane.f32.xlu0 %v694
        %v696 = vpop.xlane.xlu0 %695
        %v697 = vrcp.pop %v693
        %v698 = vrcp.pop %v696
        %v699 = vmul.f32 %v688, %v697
        %v700 = vmul.f32 %v690, %v698
        %v701 = vpack.c.bf16 %v699, %v699
        %v702 = vpack.c.bf16 %v700, %v700
        %v704 = vsel %vm678, %v701, 0
        %vm706 = vcmask 1043456
        %v708 = vsel %vm706, %v345, 0
        %710 = vmatprep.subr.bf16.mxu0 0
        %711 = vmatpush1.bf16.msra.mxu0 0
        %712 = vmatprep.subr.bf16.mxu0 0
        %713 = vmatpush1.bf16.msra.mxu0 0
        %714 = vmatprep.subr.bf16.mxu0 0
        %715 = vmatpush1.bf16.msra.mxu0 0
        %716 = vmatprep.subr.bf16.mxu0 0
        %717 = vmatpush1.bf16.msra.mxu0 0
        %718 = vmatprep.subr.bf16.mxu0 0
        %719 = vmatpush1.bf16.msra.mxu0 0
        %720 = vmatprep.subr.bf16.mxu0 0
        %721 = vmatpush1.bf16.msra.mxu0 0
        %722 = vmatprep.subr.bf16.mxu0 0
        %723 = vmatpush1.bf16.msra.mxu0 0
        %724 = vmatprep.subr.bf16.mxu0 0
        %725 = vmatpush1.bf16.msra.mxu0 %v708
        %726 = vmatprep.subr.bf16.mxu0 0
        %727 = vmatpush2.bf16.msra.mxu0 0
        %728 = vmatprep.subr.bf16.mxu0 0
        %729 = vmatpush2.bf16.msra.mxu0 0
        %730 = vmatprep.subr.bf16.mxu0 0
        %731 = vmatpush2.bf16.msra.mxu0 0
        %732 = vmatprep.subr.bf16.mxu0 0
        %733 = vmatpush2.bf16.msra.mxu0 0
        %734 = vmatprep.subr.bf16.mxu0 0
        %735 = vmatpush2.bf16.msra.mxu0 0
        %736 = vmatprep.subr.bf16.mxu0 0
        %737 = vmatpush2.bf16.msra.mxu0 0
        %738 = vmatprep.subr.bf16.mxu0 0
        %739 = vmatpush2.bf16.msra.mxu0 0
        %740 = vmatprep.subr.bf16.mxu0 0
        %741 = vmatpush2.bf16.msra.mxu0 0
        %742 = vmatprep.mubr.bf16.mxu0 0
        %743 = vmatmul.mubr.bf16.gmra.mxu0 %v704
        %v744 = vpop.f32.mrf.mxu0
        %v745 = vadd.f32 0.0, %v744
        %v746 = vpop.f32.mrf.mxu0
        %v747 = vpop.f32.mrf.mxu0
        %v748 = vpop.f32.mrf.mxu0
        %749 = vdwg.mxu0
        %v751 = vsel %vm678, %v702, 0
        %v754 = vsel %vm706, %v346, 0
        %756 = vmatprep.subr.bf16.mxu0 0
        %757 = vmatpush1.bf16.msra.mxu0 0
        %758 = vmatprep.subr.bf16.mxu0 0
        %759 = vmatpush1.bf16.msra.mxu0 0
        %760 = vmatprep.subr.bf16.mxu0 0
        %761 = vmatpush1.bf16.msra.mxu0 0
        %762 = vmatprep.subr.bf16.mxu0 0
        %763 = vmatpush1.bf16.msra.mxu0 0
        %764 = vmatprep.subr.bf16.mxu0 0
        %765 = vmatpush1.bf16.msra.mxu0 0
        %766 = vmatprep.subr.bf16.mxu0 0
        %767 = vmatpush1.bf16.msra.mxu0 0
        %768 = vmatprep.subr.bf16.mxu0 0
        %769 = vmatpush1.bf16.msra.mxu0 0
        %770 = vmatprep.subr.bf16.mxu0 0
        %771 = vmatpush1.bf16.msra.mxu0 %v754
        %772 = vmatprep.subr.bf16.mxu0 0
        %773 = vmatpush2.bf16.msra.mxu0 0
        %774 = vmatprep.subr.bf16.mxu0 0
        %775 = vmatpush2.bf16.msra.mxu0 0
        %776 = vmatprep.subr.bf16.mxu0 0
        %777 = vmatpush2.bf16.msra.mxu0 0
        %778 = vmatprep.subr.bf16.mxu0 0
        %779 = vmatpush2.bf16.msra.mxu0 0
        %780 = vmatprep.subr.bf16.mxu0 0
        %781 = vmatpush2.bf16.msra.mxu0 0
        %782 = vmatprep.subr.bf16.mxu0 0
        %783 = vmatpush2.bf16.msra.mxu0 0
        %784 = vmatprep.subr.bf16.mxu0 0
        %785 = vmatpush2.bf16.msra.mxu0 0
        %786 = vmatprep.subr.bf16.mxu0 0
        %787 = vmatpush2.bf16.msra.mxu0 0
        %788 = vmatprep.mubr.bf16.mxu0 0
        %789 = vmatmul.mubr.bf16.gmra.mxu0 %v751
        %v790 = vpop.f32.mrf.mxu0
        %v791 = vadd.f32 0.0, %v790
        %v792 = vpop.f32.mrf.mxu0
        %v793 = vpop.f32.mrf.mxu0
        %v794 = vpop.f32.mrf.mxu0
        %795 = vdwg.mxu0
        %796 = vst [vmem:[%s338] sm:$0xff] %v745
        %797 = vst [vmem:[%s338 + $0x8] sm:$0xff] %v791
        %s798 = sand.u32 %s171, 1
        %s799 = scalar_lea.sflag [#allocation4], %s798
        %s800 = sand.u32 %s171, 1
        %s801 = smul.addr %s800, 16
        %s802 = scalar_lea.vmem [#allocation10], %s801
        // Predicated region
        $region61: #{tpu_custom_call.1} parent=43 // pred_check
          %p803 = pneg %p181
        $region62: #{tpu_custom_call.1} parent=43 // pred_check_branch
          %805 = sbr.rel (%p803) target = $region64
        $region63: #{tpu_custom_call.1} parent=43 // pred_region
          %s806 = smul.u32 2, %s27
          %s808 = ssub.s32 256, 256
          %809 = vsyncadd %s799, %s808
          %s810 = smul.addr %s806, 128
          %s811 = scalar_lea.hbm %s6, %s810
          %s812 = sshll.u32 %s802, 4
          %s813 = int_to_ptr.vmem [resolvable:$true] %s812
          %818 = dma.vmem_to_hbm [thread:$0]  %s813, 256, %s811, %s799, 128, 128, 8
        $region64: #{tpu_custom_call.1} parent=43 // pred_fallthru
          _
      $region44: #{tpu_custom_call.1} parent=5 // pred_fallthru
        _
      %p819 = scmp.le.s32.totalorder 2, %s22
      // Predicated region
      $region65: #{tpu_custom_call.1} parent=5 // pred_check
        %p820 = pneg %p819
      $region66: #{tpu_custom_call.1} parent=5 // pred_check_branch
        %822 = sbr.rel (%p820) target = $region68
      $region67: #{tpu_custom_call.1} parent=5 // pred_region
        %s823 = ssub.s32 %s22, 2
        // Predicated region
        $region69: #{tpu_custom_call.1} parent=67 // pred_check
          %p824 = pneg %p187
        $region70: #{tpu_custom_call.1} parent=67 // pred_check_branch
          %826 = sbr.rel (%p824) target = $region72
        $region71: #{tpu_custom_call.1} parent=67 // pred_region
          %s827 = sand.u32 %s172, 1
          %s828 = scalar_lea.sflag [#allocation4], %s827
          %s829 = sand.u32 %s172, 1
          %s830 = smul.addr %s829, 16
          %s831 = scalar_lea.vmem [#allocation10], %s830
          %832 = dma.done %s828, 256
        $region72: #{tpu_custom_call.1} parent=67 // pred_fallthru
          _
      $region68: #{tpu_custom_call.1} parent=5 // pred_fallthru
        _
    $region6: #{tpu_custom_call.1} parent=1 // loop_footer
      %s26 = sadd.s32 1, %s22
    $region7: #{tpu_custom_call.1} parent=1 // loop_footer_branch
      %21 = sbr.rel target = $region3
    $region8: #{tpu_custom_call.1} parent=1 // loop_exit
      _
    %833 = vsyncpa [#allocation3], 1
    %s834 = scalar_lea.sflag [#allocation3], 1
    %835 = vsyncpa %s834, 1
    %836 = vsyncpa [#allocation6], 1
    %s837 = scalar_lea.sflag [#allocation6], 1
    %838 = vsyncpa %s837, 1
    %839 = vsyncpa [#allocation9], 1
    %840 = vsyncpa [#allocation4], 1
    %s841 = scalar_lea.sflag [#allocation4], 1
    %842 = vsyncpa %s841, 1

</llo_original>
